<compile_context>
chip_gen: v5e
topology: v5e:2x2
jax: 0.10.0
libtpu: 0.0.40
codegen_flags: <defaults>
</compile_context>

<pallas_src>
import jax
import jax.numpy as jnp
from jax import lax
from jax.experimental import pallas as pl
from jax.experimental.pallas import tpu as pltpu


def _round_up(x, m):
    return ((x + m - 1) // m) * m


# ---------------------------------------------------------------------------
# Pallas kernel: one (TILE_M, d_model) output tile of  O = X @ W^T,
# computed as (X^T)^T @ (W^T)  with both operands carrying K on the sublane axis.
# ---------------------------------------------------------------------------
def _embed_kernel(xT_ref, wT_ref, o_ref):
    # xT_ref: (patch_len, TILE_M)  bf16 — K on sublanes, M on lanes (dense loads)
    # wT_ref: (patch_len, d_model) bf16 — same block every step -> resident in VMEM
    # o_ref : (TILE_M, d_model)         — output already in (M, d_model) layout
    o_ref[...] = lax.dot_general(
        xT_ref[...],
        wT_ref[...],
        dimension_numbers=(((0,), (0,)), ((), ())),  # contract patch_len dims (A^T·B)
        preferred_element_type=jnp.float32,
    ).astype(o_ref.dtype)


def value_embedding_pallas(xT, wT, *, tile_m=16384, out_dtype=jnp.float32):
    """Compute patches @ W^T with the patches supplied transposed.

    xT: (patch_len, M) bf16 transposed activations, M = B*C*NP.
    wT: (patch_len, d_model) bf16 weight (nn.Linear weight, transposed).
    Returns (M, d_model) in `out_dtype`.
    """
    K, M = xT.shape
    K2, N = wT.shape
    assert K == K2

    min_tile = 128
    # Keep >= 2 grid steps when M is large enough so v7x's two TensorCores both
    # get work under dimension_semantics=("parallel",).
    if M > 2 * min_tile:
        tile_m = min(tile_m, _round_up(pl.cdiv(M, 2), min_tile))
    # Clamp for small inputs; the ragged last block is masked by Pallas (no manual
    # pad of M, no output slice).
    tile_m = max(min_tile, min(tile_m, _round_up(M, min_tile)))
    grid = (pl.cdiv(M, tile_m),)

    out_itemsize = jnp.dtype(out_dtype).itemsize
    cost = pl.CostEstimate(
        flops=2 * M * N * K,
        transcendentals=0,
        bytes_accessed=(
            xT.size * xT.dtype.itemsize
            + wT.size * wT.dtype.itemsize
            + M * N * out_itemsize
        ),
    )

    return pl.pallas_call(
        _embed_kernel,
        out_shape=jax.ShapeDtypeStruct((M, N), out_dtype),
        grid=grid,
        in_specs=[
            # Lane-dense activation slab for this tile: (patch_len, tile_m).
            pl.BlockSpec((K, tile_m), lambda i: (0, i)),
            # Tiny weight: same block every step -> DMA'd once, stays resident.
            pl.BlockSpec((K, N), lambda i: (0, 0)),
        ],
        out_specs=pl.BlockSpec((tile_m, N), lambda i: (i, 0)),
        compiler_params=pltpu.CompilerParams(
            dimension_semantics=("parallel",),
        ),
        cost_estimate=cost,
    )(xT, wT)


# ---------------------------------------------------------------------------
# Glue (pure JAX, gather-free): replication pad + strided-slice unfold.
# ---------------------------------------------------------------------------
def _pad_and_unfold(x, patch_len, stride, padding):
    """Returns:
       x_patch: (B*C, NP, patch_len) f32  -- module's second output
       xT     : (patch_len, B*C*NP)  bf16 -- transposed activations for the kernel
    """
    B, C, L = x.shape
    # ReplicationPad1d((0, padding))
    xp = jnp.pad(x, ((0, 0), (0, 0), (0, padding)), mode="edge")
    Lp = L + padding
    NP = (Lp - patch_len) // stride + 1
    last = (NP - 1) * stride
    # patch_len static strided slices instead of a 2-D fancy-index gather.
    cols = [xp[..., j : j + last + 1 : stride] for j in range(patch_len)]  # (B, C, NP)
    x_patch = jnp.stack(cols, axis=-1).reshape(B * C, NP, patch_len)       # f32
    # Build the kernel's slab directly in bf16 (halves the glue-side HBM write).
    xT = jnp.stack([c.astype(jnp.bfloat16) for c in cols], axis=0)
    xT = xT.reshape(patch_len, B * C * NP)
    return x_patch, xT


class PatchEmbeddingPallas:
    def __init__(self, d_model, patch_len, stride, padding, dropout, key,
                 out_dtype=jnp.float32):
        self.d_model = d_model
        self.patch_len = patch_len
        self.stride = stride
        self.padding = padding
        self.out_dtype = out_dtype
        # nn.Linear(patch_len, d_model, bias=False): weight (d_model, patch_len),
        # default kaiming-uniform-style bound 1/sqrt(patch_len).
        bound = 1.0 / float(patch_len) ** 0.5
        self.weight = jax.random.uniform(
            key, (d_model, patch_len), jnp.float32, minval=-bound, maxval=bound
        )
        # Kernel wants (patch_len, d_model) (A^T·B form); pre-cast the tiny weight once.
        self.weight_T_bf16 = self.weight.T.astype(jnp.bfloat16)
        # Dropout is identity in eval mode.
        # TODO(synk): training-mode dropout (RNG mask) not implemented; eval semantics only.

    def __call__(self, x):
        B, C, L = x.shape
        x_patch, xT = _pad_and_unfold(x, self.patch_len, self.stride, self.padding)
        NP = x_patch.shape[1]
        emb_flat = value_embedding_pallas(xT, self.weight_T_bf16,
                                          out_dtype=self.out_dtype)
        # (B*C*NP, d_model) -> (B*C, NP, d_model): free row-major view, no transpose.
        emb = emb_flat.reshape(B * C, NP, self.d_model)
        return emb, x_patch


if __name__ == "__main__":
    key = jax.random.PRNGKey(0)
    kx, kw = jax.random.split(key)

    # Small shapes consistent with the module: B=2, C=4 vars, L=16 time steps.
    B, C, L = 2, 4, 16
    d_model, patch_len, stride, padding, dropout = 32, 8, 4, 4, 0.1

    x = jax.random.normal(kx, (B, C, L), jnp.float32)
    model = PatchEmbeddingPallas(d_model, patch_len, stride, padding, dropout, kw)

    emb, x_patch = model(x)
    emb = jax.block_until_ready(emb)
    x_patch = jax.block_until_ready(x_patch)

    # ---- reference (plain JAX; same eval-mode semantics as the torch module) ----
    xp = jnp.pad(x, ((0, 0), (0, 0), (0, padding)), mode="edge")
    NP = (L + padding - patch_len) // stride + 1
    idx = jnp.arange(NP)[:, None] * stride + jnp.arange(patch_len)[None, :]
    ref_patch = xp[..., idx].reshape(B * C, NP, patch_len)

    # Apples-to-apples reference: same bf16-operand / f32-accumulate dot.
    ref_emb_bf16 = jnp.dot(
        ref_patch.astype(jnp.bfloat16).reshape(-1, patch_len),
        model.weight.astype(jnp.bfloat16).T,
        preferred_element_type=jnp.float32,
    ).reshape(B * C, NP, d_model)
    # Full-precision reference (loose tolerance: bf16 operand rounding).
    ref_emb_f32 = ref_patch @ model.weight.T

    assert emb.shape == (B * C, NP, d_model)
    assert x_patch.shape == (B * C, NP, patch_len)
    assert jnp.allclose(x_patch, ref_patch)
    assert jnp.allclose(emb.astype(jnp.float32), ref_emb_bf16, atol=1e-4, rtol=1e-4)
    assert jnp.allclose(emb.astype(jnp.float32), ref_emb_f32, atol=5e-2, rtol=5e-2)

    print("KERNEL_OK")
</pallas_src>

<mosaic_0001>
module attributes {stable_mosaic.version = 11 : i64} {
  func.func @_embed_kernel(%arg0: i32, %arg1: memref<8x128xbf16, #tpu.memory_space<vmem>>, %arg2: memref<8x32xbf16, #tpu.memory_space<vmem>>, %arg3: memref<128x32xf32, #tpu.memory_space<vmem>>) attributes {dimension_semantics = [#tpu.dimension_semantics<parallel>], iteration_bounds = array<i64: 1>, scalar_prefetch = 0 : i64, scratch_operands = 0 : i64, tpu.core_type = #tpu.core_type<tc>, window_params = [{transform_indices = @transform_0, window_bounds = array<i64: 8, 128>}, {pipeline_mode = #tpu.pipeline_mode<synchronous>, transform_indices = @transform_1, window_bounds = array<i64: 8, 32>}, {transform_indices = @transform_2, window_bounds = array<i64: 128, 32>}]} {
    %c0 = arith.constant 0 : index
    %c0_0 = arith.constant 0 : index
    %0 = vector.load %arg1[%c0, %c0_0] : memref<8x128xbf16, #tpu.memory_space<vmem>>, vector<8x128xbf16>
    %c0_1 = arith.constant 0 : index
    %c0_2 = arith.constant 0 : index
    %1 = vector.load %arg2[%c0_1, %c0_2] : memref<8x32xbf16, #tpu.memory_space<vmem>>, vector<8x32xbf16>
    %cst = arith.constant dense<0.000000e+00> : vector<128x32xf32>
    %2 = tpu.matmul %0, %1, %cst {dimension_numbers = #tpu.dot_dimension_numbers<[0], [0], [1], [1], [0, 1, 1, 1], [], []>} : vector<8x128xbf16>, vector<8x32xbf16>, vector<128x32xf32> -> vector<128x32xf32>
    %c0_3 = arith.constant 0 : index
    %c0_4 = arith.constant 0 : index
    %3 = vector.load %arg3[%c0_3, %c0_4] : memref<128x32xf32, #tpu.memory_space<vmem>>, vector<128x32xf32>
    tpu.vector_store %arg3[%c0_3, %c0_4], %2 {strides = array<i32>} : memref<128x32xf32, #tpu.memory_space<vmem>>, vector<128x32xf32>,
    return
  }
  func.func @transform_0(%arg0: i32) -> (i32, i32) {
    %c0_i32 = arith.constant 0 : i32
    %c0_i32_0 = arith.constant 0 : i32
    return %c0_i32, %arg0 : i32, i32
  }
  func.func @transform_1(%arg0: i32) -> (i32, i32) {
    %c0_i32 = arith.constant 0 : i32
    %c0_i32_0 = arith.constant 0 : i32
    %c0_i32_1 = arith.constant 0 : i32
    return %c0_i32, %c0_i32_0 : i32, i32
  }
  func.func @transform_2(%arg0: i32) -> (i32, i32) {
    %c0_i32 = arith.constant 0 : i32
    %c0_i32_0 = arith.constant 0 : i32
    return %arg0, %c0_i32 : i32, i32
  }
}

</mosaic_0001>

<llo_original>
// kernel: tpu_custom_call.1
$region0: #{tpu_custom_call.1}
  #allocation0 [shape = 'u32[]', space=smem, size = 0x4, offset = 0x4, fixed_abs, tag = 'smem constant byte address 0x4 - core index']
  #allocation1 [shape = 'u32[72,128]{1,0:T(1,128)}', space=vmem, size = 0x9000, scoped, tag = 'internal scratch']
  %s0 = inlined_call_operand.hbm [shape: bf16[8,32], index: 0, kind: input, shape index: {}]
  %s1 = inlined_call_operand.hbm [shape: bf16[8,32], index: 1, kind: input, shape index: {}]
  %s2 = inlined_call_operand.hbm [shape: f32[32,32], index: 2, kind: output, shape index: {}]
  %s3 = sld [smem:[#allocation0]]
  $region26: #{tpu_custom_call.1} parent=0
    _
  %s5 = ssub.s32 1, %s3
  %s6 = scalar_select 0, %s5, %s3
  $region1: #{tpu_custom_call.1} parent=0
    #allocation2 [shape = 'u8[2048]{0}', space=vmem, size = 0x800, scoped, tag = 'input window, operand 0, single buffered']
    #allocation3 [shape = 's32[1]{0}', space=sflag, size = 0x4, scoped, tag = 'scoped memory for tpu_custom_call.1']
    #allocation4 [shape = 's32[1]{0}', space=sflag, size = 0x4, scoped, tag = 'scoped memory for tpu_custom_call.1']
    #allocation5 [shape = 'u8[2048]{0}', space=vmem, size = 0x800, scoped, tag = 'input window, operand 1, single buffered']
    #allocation6 [shape = 's32[1]{0}', space=sflag, size = 0x4, scoped, tag = 'scoped memory for tpu_custom_call.1']
    #allocation7 [shape = 'u8[65536]{0}', space=vmem, size = 0x10000, scoped, tag = 'output window, operand 0, single buffered']
    %7 = vsyncpa [#allocation3], 0
    %8 = vsyncpa [#allocation6], 0
    %9 = vsyncpa [#allocation4], 0
    // Predicated region
    $region2: #{tpu_custom_call.1} parent=1 // pred_check
      _
    $region3: #{tpu_custom_call.1} parent=1 // pred_check_branch
      %11 = sbr.rel (0) target = $region5
    $region4: #{tpu_custom_call.1} parent=1 // pred_region
      %13 = vsyncadd [#allocation3], 0
      %s15 = sshll.u32 %s0, 4
      %s16 = int_to_ptr.hbm [resolvable:$true] %s15
      %s17 = sshll.u32 [#allocation2], 4
      %s18 = int_to_ptr.vmem [resolvable:$true] %s17
      %20 = dma.hbm_to_vmem [thread:$0]  %s16, 64, %s18, [#allocation3]
    $region5: #{tpu_custom_call.1} parent=1 // pred_fallthru
      _
    // Predicated region
    $region6: #{tpu_custom_call.1} parent=1 // pred_check
      _
    $region7: #{tpu_custom_call.1} parent=1 // pred_check_branch
      %22 = sbr.rel (0) target = $region9
    $region8: #{tpu_custom_call.1} parent=1 // pred_region
      %24 = vsyncadd [#allocation6], 0
      %s26 = sshll.u32 %s1, 4
      %s27 = int_to_ptr.hbm [resolvable:$true] %s26
      %s28 = sshll.u32 [#allocation5], 4
      %s29 = int_to_ptr.vmem [resolvable:$true] %s28
      %31 = dma.hbm_to_vmem [thread:$0]  %s27, 64, %s29, [#allocation6]
    $region9: #{tpu_custom_call.1} parent=1 // pred_fallthru
      _
    // Predicated region
    $region10: #{tpu_custom_call.1} parent=1 // pred_check
      _
    $region11: #{tpu_custom_call.1} parent=1 // pred_check_branch
      %33 = sbr.rel (0) target = $region13
    $region12: #{tpu_custom_call.1} parent=1 // pred_region
      %35 = dma.done [#allocation3], 64
    $region13: #{tpu_custom_call.1} parent=1 // pred_fallthru
      _
    // Predicated region
    $region14: #{tpu_custom_call.1} parent=1 // pred_check
      _
    $region15: #{tpu_custom_call.1} parent=1 // pred_check_branch
      %37 = sbr.rel (0) target = $region17
    $region16: #{tpu_custom_call.1} parent=1 // pred_region
      %39 = dma.done [#allocation6], 64
    $region17: #{tpu_custom_call.1} parent=1 // pred_fallthru
      _
    %v41 = vld [vmem:[#allocation2] sm:$0xf]
    %v42 = vld [vmem:[#allocation5] sm:$0xf]
    %43 = vxpose.xlu0.c.b16.start [1/8] %v41, 128
    %44 = vxpose.xlu0.c.b16.cont [2/8] 0, 128
    %45 = vxpose.xlu0.c.b16.cont [3/8] 0, 128
    %46 = vxpose.xlu0.c.b16.cont [4/8] 0, 128
    %47 = vxpose.xlu0.c.b16.cont [5/8] 0, 128
    %48 = vxpose.xlu0.c.b16.cont [6/8] 0, 128
    %49 = vxpose.xlu0.c.b16.cont [7/8] 0, 128
    %50 = vxpose.xlu0.c.b16.end [8/8] 0, 128
    %v51 = vpop.trf.xlu0
    %v52 = vpop.trf.xlu0
    %v53 = vpop.trf.xlu0
    %v54 = vpop.trf.xlu0
    %v55 = vpop.trf.xlu0
    %v56 = vpop.trf.xlu0
    %v57 = vpop.trf.xlu0
    %v58 = vpop.trf.xlu0
    %vm59 = vcmask 64512
    %v61 = vsel %vm59, %v51, 0
    %v64 = vsel %vm59, %v52, 0
    %v67 = vsel %vm59, %v53, 0
    %v70 = vsel %vm59, %v54, 0
    %v73 = vsel %vm59, %v55, 0
    %v76 = vsel %vm59, %v56, 0
    %v79 = vsel %vm59, %v57, 0
    %v82 = vsel %vm59, %v58, 0
    %vm84 = vcmask 1043456
    %v86 = vsel %vm84, %v42, 0
    %88 = vmatpush.bf16.msra.mxu0 0
    %89 = vmatpush.bf16.msra.mxu0 0
    %90 = vmatpush.bf16.msra.mxu0 0
    %91 = vmatpush.bf16.msra.mxu0 0
    %92 = vmatpush.bf16.msra.mxu0 0
    %93 = vmatpush.bf16.msra.mxu0 0
    %94 = vmatpush.bf16.msra.mxu0 0
    %95 = vmatpush.bf16.msra.mxu0 %v86
    %96 = vmatmul.bf16.gmra.mxu0 %v61
    %v97 = vpop.f32.mrf.mxu0
    %v98 = vadd.f32 0.0, %v97
    %v99 = vpop.f32.mrf.mxu0
    %v100 = vadd.f32 0.0, %v99
    %101 = vmatmul.bf16.gmra.mxu0 %v64
    %v102 = vpop.f32.mrf.mxu0
    %v103 = vadd.f32 0.0, %v102
    %v104 = vpop.f32.mrf.mxu0
    %v105 = vadd.f32 0.0, %v104
    %106 = vmatmul.bf16.gmra.mxu0 %v67
    %v107 = vpop.f32.mrf.mxu0
    %v108 = vadd.f32 0.0, %v107
    %v109 = vpop.f32.mrf.mxu0
    %v110 = vadd.f32 0.0, %v109
    %111 = vmatmul.bf16.gmra.mxu0 %v70
    %v112 = vpop.f32.mrf.mxu0
    %v113 = vadd.f32 0.0, %v112
    %v114 = vpop.f32.mrf.mxu0
    %v115 = vadd.f32 0.0, %v114
    %116 = vmatmul.bf16.gmra.mxu0 %v73
    %v117 = vpop.f32.mrf.mxu0
    %v118 = vadd.f32 0.0, %v117
    %v119 = vpop.f32.mrf.mxu0
    %v120 = vadd.f32 0.0, %v119
    %121 = vmatmul.bf16.gmra.mxu0 %v76
    %v122 = vpop.f32.mrf.mxu0
    %v123 = vadd.f32 0.0, %v122
    %v124 = vpop.f32.mrf.mxu0
    %v125 = vadd.f32 0.0, %v124
    %126 = vmatmul.bf16.gmra.mxu0 %v79
    %v127 = vpop.f32.mrf.mxu0
    %v128 = vadd.f32 0.0, %v127
    %v129 = vpop.f32.mrf.mxu0
    %v130 = vadd.f32 0.0, %v129
    %131 = vmatmul.bf16.gmra.mxu0 %v82
    %v132 = vpop.f32.mrf.mxu0
    %v133 = vadd.f32 0.0, %v132
    %v134 = vpop.f32.mrf.mxu0
    %v135 = vadd.f32 0.0, %v134
    %136 = vdwg.mxu0
    %vm137 = vcmask 261120
    %138 = vst.msk [vmem:[#allocation7] sm:$0xff] %vm137, %v98
    %139 = vst.msk [vmem:[#allocation7 + $0x8] sm:$0xff] %vm137, %v100
    %140 = vst.msk [vmem:[#allocation7 + $0x10] sm:$0xff] %vm137, %v103
    %141 = vst.msk [vmem:[#allocation7 + $0x18] sm:$0xff] %vm137, %v105
    %142 = vst.msk [vmem:[#allocation7 + $0x20] sm:$0xff] %vm137, %v108
    %143 = vst.msk [vmem:[#allocation7 + $0x28] sm:$0xff] %vm137, %v110
    %144 = vst.msk [vmem:[#allocation7 + $0x30] sm:$0xff] %vm137, %v113
    %145 = vst.msk [vmem:[#allocation7 + $0x38] sm:$0xff] %vm137, %v115
    %146 = vst.msk [vmem:[#allocation7 + $0x40] sm:$0xff] %vm137, %v118
    %147 = vst.msk [vmem:[#allocation7 + $0x48] sm:$0xff] %vm137, %v120
    %148 = vst.msk [vmem:[#allocation7 + $0x50] sm:$0xff] %vm137, %v123
    %149 = vst.msk [vmem:[#allocation7 + $0x58] sm:$0xff] %vm137, %v125
    %150 = vst.msk [vmem:[#allocation7 + $0x60] sm:$0xff] %vm137, %v128
    %151 = vst.msk [vmem:[#allocation7 + $0x68] sm:$0xff] %vm137, %v130
    %152 = vst.msk [vmem:[#allocation7 + $0x70] sm:$0xff] %vm137, %v133
    %153 = vst.msk [vmem:[#allocation7 + $0x78] sm:$0xff] %vm137, %v135
    // Predicated region
    $region18: #{tpu_custom_call.1} parent=1 // pred_check
      _
    $region19: #{tpu_custom_call.1} parent=1 // pred_check_branch
      %155 = sbr.rel (0) target = $region21
    $region20: #{tpu_custom_call.1} parent=1 // pred_region
      %157 = vsyncadd [#allocation4], 1536
      %s158 = sshll.u32 [#allocation7], 4
      %s159 = int_to_ptr.vmem [resolvable:$true] %s158
      %s160 = sshll.u32 %s2, 4
      %s161 = int_to_ptr.hbm [resolvable:$true] %s160
      %166 = dma.vmem_to_hbm [thread:$0]  %s159, 512, %s161, [#allocation4], 128, 128, 8
    $region21: #{tpu_custom_call.1} parent=1 // pred_fallthru
      _
    // Predicated region
    $region22: #{tpu_custom_call.1} parent=1 // pred_check
      _
    $region23: #{tpu_custom_call.1} parent=1 // pred_check_branch
      %168 = sbr.rel (0) target = $region25
    $region24: #{tpu_custom_call.1} parent=1 // pred_region
      %170 = dma.done [#allocation4], 2048
    $region25: #{tpu_custom_call.1} parent=1 // pred_fallthru
      _
    %171 = vsyncpa [#allocation3], 1
    %172 = vsyncpa [#allocation6], 1
    %173 = vsyncpa [#allocation4], 1

</llo_original>
